<compile_context>
chip_gen: v6e
topology: v6e:2x2x1
jax: 0.10.0
libtpu: 0.0.40
codegen_flags: <defaults>
</compile_context>

<pallas_src>
import functools
import math

import jax
import jax.numpy as jnp
import numpy as np
from jax.experimental import pallas as pl
from jax.experimental.pallas import tpu as pltpu


# ----------------------------------------------------------------------------
# Tiled linear kernel:  y = x @ W.T + b   (torch nn.Linear semantics)
# ----------------------------------------------------------------------------

def _linear_kernel(x_ref, w_ref, b_ref, o_ref, acc_ref):
    k = pl.program_id(2)

    @pl.when(k == 0)
    def _init():
        acc_ref[...] = jnp.zeros_like(acc_ref)

    # x tile: [tm, tk], w tile: [tn, tk] (torch [out, in] layout) -> contract K.
    acc_ref[...] += jax.lax.dot_general(
        x_ref[...], w_ref[...],
        (((1,), (1,)), ((), ())),
        preferred_element_type=jnp.float32)

    @pl.when(k == pl.num_programs(2) - 1)
    def _finish():
        o_ref[...] = (acc_ref[...] + b_ref[...]).astype(o_ref.dtype)


def _pick_tile(dim, target, quantum):
    """Largest tile <= target that divides `dim` and respects the (8,128)
    tiling quantum; falls back to the full dim (always legal)."""
    if dim <= target:
        return dim
    t = target
    while t >= quantum:
        if dim % t == 0:
            return t
        t //= 2
    return dim


def pallas_linear(x, w, b, *, out_dtype=None, tm=512, tn=512, tk=1024):
    """x: [M, K], w: [N, K] (torch layout), b: [N]  ->  [M, N] in out_dtype."""
    m, kdim = x.shape
    n = w.shape[0]
    out_dtype = out_dtype if out_dtype is not None else x.dtype
    tm = _pick_tile(m, tm, 8)
    tn = _pick_tile(n, tn, 128)
    tk = _pick_tile(kdim, tk, 128)
    grid = (m // tm, n // tn, kdim // tk)
    return pl.pallas_call(
        _linear_kernel,
        out_shape=jax.ShapeDtypeStruct((m, n), out_dtype),
        grid=grid,
        in_specs=[
            pl.BlockSpec((tm, tk), lambda i, j, k: (i, k)),
            pl.BlockSpec((tn, tk), lambda i, j, k: (j, k)),
            pl.BlockSpec((1, tn), lambda i, j, k: (0, j)),
        ],
        out_specs=pl.BlockSpec((tm, tn), lambda i, j, k: (i, j)),
        scratch_shapes=[pltpu.VMEM((tm, tn), jnp.float32)],
        compiler_params=pltpu.CompilerParams(
            dimension_semantics=("parallel", "parallel", "arbitrary"),
            vmem_limit_bytes=48 * 1024 * 1024),
    )(x, w, b.reshape(1, n))


# ----------------------------------------------------------------------------
# Multi-modal attention kernel (per batch element, all heads, lane-dense out)
# ----------------------------------------------------------------------------

def _mm_attn_kernel(tab_ref, yt_ref, yi_ref, yst_ref, ysi_ref, o_ref,
                    *, n_heads, head_dim, embed_dim, inv_scale, approx):
    d = head_dim
    e = embed_dim
    tab = tab_ref[...]                       # [2R+1, D] relative-pos table
    num_rel = tab.shape[0]
    max_rel = (num_rel - 1) // 2

    seq = yt_ref.shape[0]
    l_ids = jax.lax.broadcasted_iota(jnp.int32, (seq, seq), 0)
    r_ids = jax.lax.broadcasted_iota(jnp.int32, (seq, seq), 1)
    rel_idx = jnp.clip(r_ids - l_ids, -max_rel, max_rel) + max_rel   # [L, L]
    # Hoisted band masks: computed once, reused across both branches & all heads.
    # TODO(synk): for 2R+1 >= ~16 replace the select band expansion with a
    # strided pltpu.roll (XLU) expansion to offload the VALU.
    band_masks = [rel_idx == p for p in range(num_rel)]

    yt = yt_ref[...]      # [L, 3E]  k | q | v   (text)
    yi = yi_ref[...]      # [L, 3E]  k | q | v   (image)
    yst = yst_ref[...]    # [L, 2E]  k | q       (text spatial)
    ysi = ysi_ref[...]    # [L, 2E]  k | q       (image spatial)

    def branch(y, ys, hh):
        lo, hi = hh * d, (hh + 1) * d
        k = y[:, lo:hi]
        q = y[:, e + lo:e + hi]
        v = y[:, 2 * e + lo:2 * e + hi]
        ks = ys[:, lo:hi]
        qs = ys[:, e + lo:e + hi]

        # Content + spatial score matmuls (bf16 MXU, f32 accumulate), scaled
        # in-kernel (reference divides both by sqrt(E), not the rel terms).
        dots = (jax.lax.dot_general(q, k, (((1,), (1,)), ((), ())),
                                    preferred_element_type=jnp.float32)
                + jax.lax.dot_general(qs, ks, (((1,), (1,)), ((), ())),
                                      preferred_element_type=jnp.float32))
        scores = dots * inv_scale

        # Shaw-style relative terms: [L, 2R+1] / [2R+1, L] logits on the MXU,
        # band-expanded with static selects accumulated directly into scores.
        q_rel = jax.lax.dot_general(q, tab, (((1,), (1,)), ((), ())),
                                    preferred_element_type=jnp.float32)
        k_rel_t = jax.lax.dot_general(tab, k, (((1,), (1,)), ((), ())),
                                      preferred_element_type=jnp.float32)
        for p in range(num_rel):                             # static, tiny (2R+1)
            scores = scores + jnp.where(
                band_masks[p], q_rel[:, p:p + 1] + k_rel_t[p:p + 1, :], 0.0)

        # Softmax (f32) with deferred normalization; PV matmul in bf16.
        m = jnp.max(scores, axis=-1, keepdims=True)
        ex = jnp.exp(scores - m)
        denom = jnp.sum(ex, axis=-1, keepdims=True)
        ctx = jax.lax.dot_general(ex.astype(v.dtype), v,
                                  (((1,), (0,)), ((), ())),
                                  preferred_element_type=jnp.float32)
        return ctx * pl.reciprocal(denom, approx=approx)

    # All heads per grid step -> one lane-dense [L, E] store (head-merge in VMEM).
    head_outs = []
    for hh in range(n_heads):
        head_outs.append(branch(yt, yst, hh) + branch(yi, ysi, hh))
    o_ref[...] = jnp.concatenate(head_outs, axis=-1).astype(o_ref.dtype)


def pallas_mm_attention(table, y_text, y_img, y_spatial, *, batch, seq_len,
                        n_heads, head_dim, embed_dim, scale, approx, out_dtype):
    """table: [2R+1, D]; y_text/y_img: [B*L, 3E]; y_spatial: [2*B*L, 2E]
    (text rows first, image rows second).  Returns [B*L, E] context."""
    p, d = table.shape
    e = embed_dim

    kernel = functools.partial(
        _mm_attn_kernel, n_heads=n_heads, head_dim=head_dim, embed_dim=e,
        inv_scale=1.0 / scale, approx=approx)

    # TODO(synk): for long L (esp. v7x 64 MiB VMEM) add a KV-axis ("arbitrary")
    # grid dimension with online-softmax scratch (flash-style) instead of
    # holding full [L, L] scores per head.
    return pl.pallas_call(
        kernel,
        out_shape=jax.ShapeDtypeStruct((batch * seq_len, e), out_dtype),
        grid=(batch,),
        in_specs=[
            pl.BlockSpec((p, d), lambda bb: (0, 0)),             # table (resident)
            pl.BlockSpec((seq_len, 3 * e), lambda bb: (bb, 0)),  # text  k|q|v
            pl.BlockSpec((seq_len, 3 * e), lambda bb: (bb, 0)),  # image k|q|v
            pl.BlockSpec((seq_len, 2 * e), lambda bb: (bb, 0)),  # text  spatial k|q
            pl.BlockSpec((seq_len, 2 * e),
                         lambda bb: (bb + batch, 0)),            # image spatial k|q
        ],
        out_specs=pl.BlockSpec((seq_len, e), lambda bb: (bb, 0)),
        compiler_params=pltpu.CompilerParams(
            dimension_semantics=("parallel",),
            vmem_limit_bytes=40 * 1024 * 1024),
    )(table, y_text, y_img, y_spatial, y_spatial)


# ----------------------------------------------------------------------------
# Parameter init + forward (glue in JAX, hot path in Pallas)
# ----------------------------------------------------------------------------

def xavier_uniform(key, shape):
    fan_out, fan_in = shape
    a = math.sqrt(6.0 / (fan_in + fan_out))
    return jax.random.uniform(key, shape, jnp.float32, -a, a)


def linear_init(key, eout, ein):
    kw, kb = jax.random.split(key)
    bound = 1.0 / math.sqrt(ein)
    w = jax.random.uniform(kw, (eout, ein), jnp.float32, -bound, bound)
    b = jax.random.uniform(kb, (eout,), jnp.float32, -bound, bound)
    return w, b


def init_params(key, embed_dim, n_heads, max_relative_position):
    head_dim = embed_dim // n_heads
    keys = jax.random.split(key, 12)
    params = {
        "rel_table_text": xavier_uniform(
            keys[0], (max_relative_position * 2 + 1, head_dim)),
        # Created for fidelity with the module; unused in forward (the
        # reference image branch also uses the *text* table).
        "rel_table_img": xavier_uniform(
            keys[1], (max_relative_position * 2 + 1, head_dim)),
    }
    names = ["fc_k_text", "fc_q_text", "fc_v_text",
             "fc_k_img", "fc_q_img", "fc_v_img",
             "fc_k_spatial", "fc_q_spatial", "to_out"]
    for i, name in enumerate(names):
        params[name] = linear_init(keys[2 + i], embed_dim, embed_dim)
    return params


def split_heads(x, n_heads):
    # [B, L, E] -> [H, B, L, D]
    b, l, e = x.shape
    d = e // n_heads
    return x.reshape(b, l, n_heads, d).transpose(2, 0, 1, 3)


def rel_pos_embed(table, seq_len, max_relative_position):
    r = jnp.arange(seq_len)
    dist = jnp.clip(r[None, :] - r[:, None],
                    -max_relative_position, max_relative_position)
    return table[dist + max_relative_position]          # [L, L, D]


def forward(params, text_feat, img_feat, text_spatial_feat, img_spatial_feat,
            *, n_heads, max_relative_position, compute_dtype=jnp.bfloat16):
    b, l, e = text_feat.shape
    d = e // n_heads
    scale = float(math.sqrt(e))
    cd = compute_dtype
    approx = jnp.dtype(cd) == jnp.dtype(jnp.bfloat16)

    # ---- fused projections: one Pallas matmul per activation tensor --------
    wk_t, bk_t = params["fc_k_text"]
    wq_t, bq_t = params["fc_q_text"]
    wv_t, bv_t = params["fc_v_text"]
    wk_i, bk_i = params["fc_k_img"]
    wq_i, bq_i = params["fc_q_img"]
    wv_i, bv_i = params["fc_v_img"]
    wk_s, bk_s = params["fc_k_spatial"]
    wq_s, bq_s = params["fc_q_spatial"]

    w_text = jnp.concatenate([wk_t, wq_t, wv_t], axis=0).astype(cd)  # [3E, E]
    b_text = jnp.concatenate([bk_t, bq_t, bv_t], axis=0)             # f32 bias
    w_img = jnp.concatenate([wk_i, wq_i, wv_i], axis=0).astype(cd)
    b_img = jnp.concatenate([bk_i, bq_i, bv_i], axis=0)
    w_sp = jnp.concatenate([wk_s, wq_s], axis=0).astype(cd)          # [2E, E]
    b_sp = jnp.concatenate([bk_s, bq_s], axis=0)

    x_t = text_feat.reshape(b * l, e).astype(cd)
    x_i = img_feat.reshape(b * l, e).astype(cd)
    # Both spatial inputs share the same fc_k_spatial / fc_q_spatial weights:
    # stack along M -> a single projection launch (text rows first, image second).
    x_s = jnp.concatenate([text_spatial_feat.reshape(b * l, e),
                           img_spatial_feat.reshape(b * l, e)],
                          axis=0).astype(cd)

    y_t = pallas_linear(x_t, w_text, b_text, out_dtype=cd)   # [BL, 3E]: k|q|v
    y_i = pallas_linear(x_i, w_img, b_img, out_dtype=cd)     # [BL, 3E]
    y_s = pallas_linear(x_s, w_sp, b_sp, out_dtype=cd)       # [2BL, 2E]: k|q

    # Attention reads the fused projection outputs directly via BlockSpec index
    # maps (no head split/transpose/concat HBM passes) and writes a head-merged
    # [B*L, E] context that feeds the output projection as-is.
    # TODO(synk): dropout omitted (eval-mode identity).
    ctx = pallas_mm_attention(
        params["rel_table_text"].astype(cd), y_t, y_i, y_s,
        batch=b, seq_len=l, n_heads=n_heads, head_dim=d, embed_dim=e,
        scale=scale, approx=approx, out_dtype=cd)             # [B*L, E]

    w_o, b_o = params["to_out"]
    out = pallas_linear(ctx, w_o.astype(cd), b_o, out_dtype=jnp.float32)
    return out.reshape(b, l, e)


# ----------------------------------------------------------------------------
# Pure-JAX reference (mirrors the PyTorch module op-for-op, f32)
# ----------------------------------------------------------------------------

def forward_ref(params, text_feat, img_feat, text_spatial_feat,
                img_spatial_feat, *, n_heads, max_relative_position):
    b, l, e = text_feat.shape
    scale = math.sqrt(e)

    def lin(name, x):
        w, bias = params[name]
        return x @ w.T + bias

    def heads(x):
        return split_heads(x, n_heads)

    kt = heads(lin("fc_k_text", text_feat))
    qt = heads(lin("fc_q_text", text_feat))
    vt = heads(lin("fc_v_text", text_feat))
    ki = heads(lin("fc_k_img", img_feat))
    qi = heads(lin("fc_q_img", img_feat))
    vi = heads(lin("fc_v_img", img_feat))
    kst = heads(lin("fc_k_spatial", text_spatial_feat))
    qst = heads(lin("fc_q_spatial", text_spatial_feat))
    ksi = heads(lin("fc_k_spatial", img_spatial_feat))
    qsi = heads(lin("fc_q_spatial", img_spatial_feat))

    rel = rel_pos_embed(params["rel_table_text"], l, max_relative_position)

    def branch(q, k, v, qs, ks):
        dots = jnp.einsum("hblk,hbtk->hblt", q, k) / scale
        rk = jnp.einsum("hbrd,lrd->hblr", k, rel)
        rq = jnp.einsum("hbld,lrd->hblr", q, rel)
        dsp = jnp.einsum("hblk,hbtk->hblt", qs, ks) / scale
        probs = jax.nn.softmax(dots + rk + rq + dsp, axis=-1)
        return jnp.einsum("hblt,hbtv->hblv", probs, v)

    ctx = branch(qt, kt, vt, qst, kst) + branch(qi, ki, vi, qsi, ksi)
    emb = ctx.transpose(1, 2, 0, 3).reshape(b, l, e)
    w_o, b_o = params["to_out"]
    return emb @ w_o.T + b_o


# ----------------------------------------------------------------------------

if __name__ == "__main__":
    embed_dim = 32
    n_heads = 4
    max_relative_position = 4
    batch = 2
    seq = 8

    key = jax.random.PRNGKey(0)
    kp, k1, k2, k3, k4 = jax.random.split(key, 5)
    params = init_params(kp, embed_dim, n_heads, max_relative_position)

    text_feat = jax.random.normal(k1, (batch, seq, embed_dim), jnp.float32)
    img_feat = jax.random.normal(k2, (batch, seq, embed_dim), jnp.float32)
    text_spatial_feat = jax.random.normal(k3, (batch, seq, embed_dim), jnp.float32)
    img_spatial_feat = jax.random.normal(k4, (batch, seq, embed_dim), jnp.float32)

    ref = forward_ref(params, text_feat, img_feat, text_spatial_feat,
                      img_spatial_feat, n_heads=n_heads,
                      max_relative_position=max_relative_position)

    # 1) f32 mode: exact-semantics verification of the kernel structure.
    out_f32 = forward(params, text_feat, img_feat, text_spatial_feat,
                      img_spatial_feat, n_heads=n_heads,
                      max_relative_position=max_relative_position,
                      compute_dtype=jnp.float32)
    out_f32 = jax.block_until_ready(out_f32)
    np.testing.assert_allclose(np.asarray(out_f32), np.asarray(ref),
                               rtol=1e-4, atol=1e-4)

    # 2) bf16 mode: MXU-native perf path (looser tolerance for bf16 rounding).
    out_bf16 = forward(params, text_feat, img_feat, text_spatial_feat,
                       img_spatial_feat, n_heads=n_heads,
                       max_relative_position=max_relative_position,
                       compute_dtype=jnp.bfloat16)
    out_bf16 = jax.block_until_ready(out_bf16)
    np.testing.assert_allclose(np.asarray(out_bf16), np.asarray(ref),
                               rtol=5e-2, atol=5e-2)

    print("KERNEL_OK")
</pallas_src>

<mosaic_0001>
module attributes {stable_mosaic.version = 11 : i64} {
  func.func @_linear_kernel(%arg0: i32, %arg1: i32, %arg2: i32, %arg3: memref<16x32xf32, #tpu.memory_space<vmem>>, %arg4: memref<96x32xf32, #tpu.memory_space<vmem>>, %arg5: memref<1x96xf32, #tpu.memory_space<vmem>>, %arg6: memref<16x96xf32, #tpu.memory_space<vmem>>, %arg7: memref<16x96xf32, #tpu.memory_space<vmem>>) attributes {dimension_semantics = [#tpu.dimension_semantics<parallel>, #tpu.dimension_semantics<parallel>, #tpu.dimension_semantics<arbitrary>], iteration_bounds = array<i64: 1, 1, 1>, scalar_prefetch = 0 : i64, scratch_operands = 1 : i64, tpu.core_type = #tpu.core_type<tc>, window_params = [{transform_indices = @transform_0, window_bounds = array<i64: 16, 32>}, {transform_indices = @transform_1, window_bounds = array<i64: 96, 32>}, {transform_indices = @transform_2, window_bounds = array<i64: 1, 96>}, {transform_indices = @transform_3, window_bounds = array<i64: 16, 96>}]} {
    %c0_i32 = arith.constant 0 : i32
    %0 = arith.cmpi eq, %arg2, %c0_i32 : i32
    %1 = arith.extui %0 : i1 to i32
    %c0_i32_0 = arith.constant 0 : i32
    %2 = arith.cmpi ne, %1, %c0_i32_0 : i32
    scf.if %2 {
      %cst_10 = arith.constant 0.000000e+00 : f32
      %12 = vector.broadcast %cst_10 : f32 to vector<16x96xf32>
      %c0_11 = arith.constant 0 : index
      %c0_12 = arith.constant 0 : index
      %13 = vector.load %arg7[%c0_11, %c0_12] : memref<16x96xf32, #tpu.memory_space<vmem>>, vector<16x96xf32>
      tpu.vector_store %arg7[%c0_11, %c0_12], %12 {strides = array<i32>} : memref<16x96xf32, #tpu.memory_space<vmem>>, vector<16x96xf32>,
    } else {
    }
    %c0 = arith.constant 0 : index
    %c0_1 = arith.constant 0 : index
    %3 = vector.load %arg7[%c0, %c0_1] : memref<16x96xf32, #tpu.memory_space<vmem>>, vector<16x96xf32>
    %c0_2 = arith.constant 0 : index
    %c0_3 = arith.constant 0 : index
    %4 = vector.load %arg3[%c0_2, %c0_3] : memref<16x32xf32, #tpu.memory_space<vmem>>, vector<16x32xf32>
    %c0_4 = arith.constant 0 : index
    %c0_5 = arith.constant 0 : index
    %5 = vector.load %arg4[%c0_4, %c0_5] : memref<96x32xf32, #tpu.memory_space<vmem>>, vector<96x32xf32>
    %cst = arith.constant dense<0.000000e+00> : vector<16x96xf32>
    %6 = tpu.matmul %4, %5, %cst {dimension_numbers = #tpu.dot_dimension_numbers<[1], [1], [0], [0], [0, 0, 1, 0], [], []>} : vector<16x32xf32>, vector<96x32xf32>, vector<16x96xf32> -> vector<16x96xf32>
    %7 = arith.addf %3, %6 : vector<16x96xf32>
    %c0_6 = arith.constant 0 : index
    %c0_7 = arith.constant 0 : index
    %8 = vector.load %arg7[%c0_6, %c0_7] : memref<16x96xf32, #tpu.memory_space<vmem>>, vector<16x96xf32>
    tpu.vector_store %arg7[%c0_6, %c0_7], %7 {strides = array<i32>} : memref<16x96xf32, #tpu.memory_space<vmem>>, vector<16x96xf32>,
    %c0_i32_8 = arith.constant 0 : i32
    %9 = arith.cmpi eq, %arg2, %c0_i32_8 : i32
    %10 = arith.extui %9 : i1 to i32
    %c0_i32_9 = arith.constant 0 : i32
    %11 = arith.cmpi ne, %10, %c0_i32_9 : i32
    scf.if %11 {
      %c0_10 = arith.constant 0 : index
      %c0_11 = arith.constant 0 : index
      %12 = vector.load %arg7[%c0_10, %c0_11] : memref<16x96xf32, #tpu.memory_space<vmem>>, vector<16x96xf32>
      %c0_12 = arith.constant 0 : index
      %c0_13 = arith.constant 0 : index
      %13 = vector.load %arg5[%c0_12, %c0_13] : memref<1x96xf32, #tpu.memory_space<vmem>>, vector<1x96xf32>
      %14 = vector.broadcast %13 : vector<1x96xf32> to vector<16x96xf32>
      %15 = arith.addf %12, %14 : vector<16x96xf32>
      %c0_14 = arith.constant 0 : index
      %c0_15 = arith.constant 0 : index
      %16 = vector.load %arg6[%c0_14, %c0_15] : memref<16x96xf32, #tpu.memory_space<vmem>>, vector<16x96xf32>
      tpu.vector_store %arg6[%c0_14, %c0_15], %15 {strides = array<i32>} : memref<16x96xf32, #tpu.memory_space<vmem>>, vector<16x96xf32>,
    } else {
    }
    return
  }
  func.func @transform_0(%arg0: i32, %arg1: i32, %arg2: i32) -> (i32, i32) {
    %c0_i32 = arith.constant 0 : i32
    return %arg0, %arg2 : i32, i32
  }
  func.func @transform_1(%arg0: i32, %arg1: i32, %arg2: i32) -> (i32, i32) {
    %c0_i32 = arith.constant 0 : i32
    return %arg1, %arg2 : i32, i32
  }
  func.func @transform_2(%arg0: i32, %arg1: i32, %arg2: i32) -> (i32, i32) {
    %c0_i32 = arith.constant 0 : i32
    %c0_i32_0 = arith.constant 0 : i32
    return %c0_i32, %arg1 : i32, i32
  }
  func.func @transform_3(%arg0: i32, %arg1: i32, %arg2: i32) -> (i32, i32) {
    %c0_i32 = arith.constant 0 : i32
    return %arg0, %arg1 : i32, i32
  }
}

</mosaic_0001>

<llo_original>
// kernel: tpu_custom_call.1
$region0: #{tpu_custom_call.1}
  #allocation0 [shape = 'u32[]', space=smem, size = 0x4, offset = 0x4, fixed_abs, tag = 'smem constant byte address 0x4 - core index']
  #allocation1 [shape = 'u32[144,128]{1,0:T(1,128)}', space=vmem, size = 0x12000, scoped, tag = 'internal scratch']
  #allocation2 [shape = 'f32[16,96]{1,0:T(8,128)}', space=vmem, size = 0x2000, scoped, tag = 'scratch operand']
  %s0 = inlined_call_operand.vmem [shape: f32[16,32], index: 0, kind: input, shape index: {}]
  %s1 = inlined_call_operand.vmem [shape: f32[96,32], index: 1, kind: input, shape index: {}]
  %s2 = inlined_call_operand.vmem [shape: f32[1,96], index: 2, kind: input, shape index: {}]
  %s3 = inlined_call_operand.hbm [shape: f32[16,96], index: 3, kind: output, shape index: {}]
  %s4 = sld [smem:[#allocation0]]
  $region30: #{tpu_custom_call.1} parent=0
    _
  %s6 = ssub.s32 1, %s4
  %s7 = scalar_select 0, %s6, %s4
  $region1: #{tpu_custom_call.1} parent=0
    #allocation3 [shape = 'u8[8192]{0}', space=vmem, size = 0x2000, scoped, tag = 'output window, operand 0, single buffered']
    #allocation4 [shape = 's32[1]{0}', space=sflag, size = 0x4, scoped, tag = 'scoped memory for tpu_custom_call.1']
    %8 = vsyncpa [#allocation4], 0
    // Predicated region
    $region2: #{tpu_custom_call.1} parent=1 // pred_check
      _
    $region3: #{tpu_custom_call.1} parent=1 // pred_check_branch
      %10 = sbr.rel (0) target = $region5
    $region4: #{tpu_custom_call.1} parent=1 // pred_region
      _
    $region5: #{tpu_custom_call.1} parent=1 // pred_fallthru
      _
    // Predicated region
    $region6: #{tpu_custom_call.1} parent=1 // pred_check
      _
    $region7: #{tpu_custom_call.1} parent=1 // pred_check_branch
      %12 = sbr.rel (0) target = $region9
    $region8: #{tpu_custom_call.1} parent=1 // pred_region
      _
    $region9: #{tpu_custom_call.1} parent=1 // pred_fallthru
      _
    // Predicated region
    $region10: #{tpu_custom_call.1} parent=1 // pred_check
      _
    $region11: #{tpu_custom_call.1} parent=1 // pred_check_branch
      %14 = sbr.rel (0) target = $region13
    $region12: #{tpu_custom_call.1} parent=1 // pred_region
      _
    $region13: #{tpu_custom_call.1} parent=1 // pred_fallthru
      _
    %p15 = scmp.eq.s32.totalorder 0, 0
    // Predicated region
    $region14: #{tpu_custom_call.1} parent=1 // pred_check
      %p16 = pneg %p15
    $region15: #{tpu_custom_call.1} parent=1 // pred_check_branch
      %18 = sbr.rel (%p16) target = $region17
    $region16: #{tpu_custom_call.1} parent=1 // pred_region
      %vm19 = vcmask 785408
      %20 = vst.msk [vmem:[#allocation2] sm:$0xff] %vm19, 0.0
      %21 = vst.msk [vmem:[#allocation2 + $0x8] sm:$0xff] %vm19, 0.0
    $region17: #{tpu_custom_call.1} parent=1 // pred_fallthru
      _
    %v22 = vld [vmem:[#allocation2] sm:$0xff]
    %v23 = vld [vmem:[#allocation2 + $0x8] sm:$0xff]
    %v24 = vld [vmem:[%s0] sm:$0xff]
    %v25 = vld [vmem:[%s0 + $0x8] sm:$0xff]
    %v26 = vld [vmem:[%s1] sm:$0xff]
    %v27 = vld [vmem:[%s1 + $0x8] sm:$0xff]
    %v28 = vld [vmem:[%s1 + $0x10] sm:$0xff]
    %v29 = vld [vmem:[%s1 + $0x18] sm:$0xff]
    %v30 = vld [vmem:[%s1 + $0x20] sm:$0xff]
    %v31 = vld [vmem:[%s1 + $0x28] sm:$0xff]
    %v32 = vld [vmem:[%s1 + $0x30] sm:$0xff]
    %v33 = vld [vmem:[%s1 + $0x38] sm:$0xff]
    %v34 = vld [vmem:[%s1 + $0x40] sm:$0xff]
    %v35 = vld [vmem:[%s1 + $0x48] sm:$0xff]
    %v36 = vld [vmem:[%s1 + $0x50] sm:$0xff]
    %v37 = vld [vmem:[%s1 + $0x58] sm:$0xff]
    %vm38 = vcmask 261120
    %v40 = vsel %vm38, %v24, 0
    %v43 = vsel %vm38, %v25, 0
    %v46 = vsel %vm38, %v26, 0
    %v49 = vsel %vm38, %v27, 0
    %v52 = vsel %vm38, %v28, 0
    %v55 = vsel %vm38, %v29, 0
    %v58 = vsel %vm38, %v30, 0
    %v61 = vsel %vm38, %v31, 0
    %v64 = vsel %vm38, %v32, 0
    %v67 = vsel %vm38, %v33, 0
    %v70 = vsel %vm38, %v34, 0
    %v73 = vsel %vm38, %v35, 0
    %v76 = vsel %vm38, %v36, 0
    %v79 = vsel %vm38, %v37, 0
    %81 = vmatprep.subr.mxu0 0.0
    %82 = vmatpush1.xpose.msra.mxu0 0.0
    %83 = vmatprep.subr.mxu0 0.0
    %84 = vmatpush1.xpose.msra.mxu0 0.0
    %85 = vmatprep.subr.mxu0 0.0
    %86 = vmatpush1.xpose.msra.mxu0 0.0
    %87 = vmatprep.subr.mxu0 0.0
    %88 = vmatpush1.xpose.msra.mxu0 0.0
    %89 = vmatprep.subr.mxu0 0.0
    %90 = vmatpush1.xpose.msra.mxu0 %v79
    %91 = vmatprep.subr.mxu0 0.0
    %92 = vmatpush1.xpose.msra.mxu0 %v76
    %93 = vmatprep.subr.mxu0 0.0
    %94 = vmatpush1.xpose.msra.mxu0 %v73
    %95 = vmatprep.subr.mxu0 0.0
    %96 = vmatpush1.xpose.msra.mxu0 %v70
    %97 = vmatprep.subr.mxu0 0.0
    %98 = vmatpush1.xpose.msra.mxu0 %v67
    %99 = vmatprep.subr.mxu0 0.0
    %100 = vmatpush1.xpose.msra.mxu0 %v64
    %101 = vmatprep.subr.mxu0 0.0
    %102 = vmatpush1.xpose.msra.mxu0 %v61
    %103 = vmatprep.subr.mxu0 0.0
    %104 = vmatpush1.xpose.msra.mxu0 %v58
    %105 = vmatprep.subr.mxu0 0.0
    %106 = vmatpush1.xpose.msra.mxu0 %v55
    %107 = vmatprep.subr.mxu0 0.0
    %108 = vmatpush1.xpose.msra.mxu0 %v52
    %109 = vmatprep.subr.mxu0 0.0
    %110 = vmatpush1.xpose.msra.mxu0 %v49
    %111 = vmatprep.subr.mxu0 0.0
    %112 = vmatpush1.xpose.msra.mxu0 %v46
    %113 = vmatprep.subr.mxu0 0.0
    %114 = vmatpush2.xpose.msra.mxu0 0.0
    %115 = vmatprep.subr.mxu0 0.0
    %116 = vmatpush2.xpose.msra.mxu0 0.0
    %117 = vmatprep.subr.mxu0 0.0
    %118 = vmatpush2.xpose.msra.mxu0 0.0
    %119 = vmatprep.subr.mxu0 0.0
    %120 = vmatpush2.xpose.msra.mxu0 0.0
    %121 = vmatprep.subr.mxu0 0.0
    %122 = vmatpush2.xpose.msra.mxu0 0.0
    %123 = vmatprep.subr.mxu0 0.0
    %124 = vmatpush2.xpose.msra.mxu0 0.0
    %125 = vmatprep.subr.mxu0 0.0
    %126 = vmatpush2.xpose.msra.mxu0 0.0
    %127 = vmatprep.subr.mxu0 0.0
    %128 = vmatpush2.xpose.msra.mxu0 0.0
    %129 = vmatprep.subr.mxu0 0.0
    %130 = vmatpush2.xpose.msra.mxu0 0.0
    %131 = vmatprep.subr.mxu0 0.0
    %132 = vmatpush2.xpose.msra.mxu0 0.0
    %133 = vmatprep.subr.mxu0 0.0
    %134 = vmatpush2.xpose.msra.mxu0 0.0
    %135 = vmatprep.subr.mxu0 0.0
    %136 = vmatpush2.xpose.msra.mxu0 0.0
    %137 = vmatprep.subr.mxu0 0.0
    %138 = vmatpush2.xpose.msra.mxu0 0.0
    %139 = vmatprep.subr.mxu0 0.0
    %140 = vmatpush2.xpose.msra.mxu0 0.0
    %141 = vmatprep.subr.mxu0 0.0
    %142 = vmatpush2.xpose.msra.mxu0 0.0
    %143 = vmatprep.subr.mxu0 0.0
    %144 = vmatpush2.xpose.msra.mxu0 0.0
    %145 = vmatprep.mubr.f32.mxu0 0.0
    %146 = vmatmul.mubr.f32.gmra.mxu0 %v40
    %v147 = vpop.f32.mrf.mxu0
    %v148 = vadd.f32 0.0, %v147
    %v149 = vpop.f32.mrf.mxu0
    %150 = vmatprep.mubr.f32.mxu0 0.0
    %151 = vmatmul.mubr.f32.gmra.mxu0 %v43
    %v152 = vpop.f32.mrf.mxu0
    %v153 = vadd.f32 0.0, %v152
    %v154 = vpop.f32.mrf.mxu0
    %155 = vdwg.mxu0
    %v156 = vadd.f32 %v22, %v148
    %v157 = vadd.f32 %v23, %v153
    %vm158 = vcmask 785408
    %159 = vst.msk [vmem:[#allocation2] sm:$0xff] %vm158, %v156
    %160 = vst.msk [vmem:[#allocation2 + $0x8] sm:$0xff] %vm158, %v157
    // Predicated region
    $region18: #{tpu_custom_call.1} parent=1 // pred_check
      %p161 = pneg %p15
    $region19: #{tpu_custom_call.1} parent=1 // pred_check_branch
      %163 = sbr.rel (%p161) target = $region21
    $region20: #{tpu_custom_call.1} parent=1 // pred_region
      %v164 = vld [vmem:[#allocation2] sm:$0xff]
      %v165 = vld [vmem:[#allocation2 + $0x8] sm:$0xff]
      %v166 = vld [vmem:[%s2] sm:$0x1]
      %v168 = vlaneseq
      %v169 = vshrl.u32 %v168, 7
      %v170 = vsub.s32 0, %v169
      %v171 = vrot.slane %v166, %v170
      %v173 = vadd.f32 %v164, %v171
      %v174 = vadd.f32 %v165, %v171
      %175 = vst.msk [vmem:[#allocation3] sm:$0xff] %vm158, %v173
      %176 = vst.msk [vmem:[#allocation3 + $0x8] sm:$0xff] %vm158, %v174
    $region21: #{tpu_custom_call.1} parent=1 // pred_fallthru
      _
    // Predicated region
    $region22: #{tpu_custom_call.1} parent=1 // pred_check
      _
    $region23: #{tpu_custom_call.1} parent=1 // pred_check_branch
      %178 = sbr.rel (0) target = $region25
    $region24: #{tpu_custom_call.1} parent=1 // pred_region
      %s180 = ssub.s32 256, 256
      %181 = vsyncadd [#allocation4], %s180
      %s182 = sshll.u32 [#allocation3], 4
      %s183 = int_to_ptr.vmem [resolvable:$true] %s182
      %188 = dma.vmem_to_hbm [thread:$0]  %s183, 256, %s3, [#allocation4], 128, 128, 8
    $region25: #{tpu_custom_call.1} parent=1 // pred_fallthru
      _
    // Predicated region
    $region26: #{tpu_custom_call.1} parent=1 // pred_check
      _
    $region27: #{tpu_custom_call.1} parent=1 // pred_check_branch
      %190 = sbr.rel (0) target = $region29
    $region28: #{tpu_custom_call.1} parent=1 // pred_region
      %191 = dma.done [#allocation4], 256
    $region29: #{tpu_custom_call.1} parent=1 // pred_fallthru
      _
    %192 = vsyncpa [#allocation4], 1

</llo_original>
